<compile_context>
chip_gen: v7x
topology: tpu7x:2x2x1
jax: 0.10.0
libtpu: 0.0.40
codegen_flags: <defaults>
</compile_context>

<pallas_src>
import jax
import jax.numpy as jnp
from jax import lax
from jax.experimental import pallas as pl
from jax.experimental.pallas import tpu as pltpu


# ---------------------------------------------------------------------------
# One-time probe of pltpu.roll's shift-direction convention (defensive: the
# kernel only relies on "result[i] = x[(i - k) % n]" semantics; if the backend
# convention is the mirror image we simply pass n-k instead of k).
# ---------------------------------------------------------------------------
_ROLL_NP_LIKE = None


def _roll_is_numpy_like():
    global _ROLL_NP_LIKE
    if _ROLL_NP_LIKE is None:
        def probe(x_ref, o_ref):
            o_ref[...] = pltpu.roll(x_ref[...], 1, 1)

        x = jnp.broadcast_to(jnp.arange(128, dtype=jnp.int32), (8, 128))
        out = pl.pallas_call(
            probe, out_shape=jax.ShapeDtypeStruct((8, 128), jnp.int32))(x)
        _ROLL_NP_LIKE = bool(out[0, 1] == 0)   # np.roll: out[1] = x[0] = 0
    return _ROLL_NP_LIKE


# ---------------------------------------------------------------------------
# Kernel
# ---------------------------------------------------------------------------
def _make_kernel(halo_h, np_like):
    """Build the row-tile kernel. `np_like` is the pltpu.roll convention flag."""

    def rot(a, k, axis):
        """r[i] = a[(i - k) % n] along `axis` (np.roll semantics); k may be <0."""
        n = a.shape[axis]
        k = k % n
        if k == 0:
            return a
        if not np_like:
            k = n - k
        return pltpu.roll(a, k, axis)

    def kernel(x_ref, halo_ref, o_ref):
        t = pl.program_id(1)

        x = x_ref[...].astype(jnp.int32)                 # fused cast, (TH, W)
        th, w = x.shape

        # Rows g0-2, g0-1  (g0 = first global row of this tile):
        #   t == 0 -> reflect off the top edge (rows 2, 1 of this tile)
        #   t  > 0 -> last two rows of the 8-row halo block (previous rows)
        halo = halo_ref[halo_h - 2:halo_h, :].astype(jnp.int32)   # (2, W)
        pm1 = jnp.where(t == 0, x[1:2, :], halo[1:2, :])          # row g0-1
        pm2 = jnp.where(t == 0, x[2:3, :], halo[0:1, :])          # row g0-2

        row = lax.broadcasted_iota(jnp.int32, (th, w), 0)
        col = lax.broadcasted_iota(jnp.int32, (th, w), 1)

        # Vertical taps (rows g-2, g-1, g) via sublane rolls + first-row fixes.
        v1 = jnp.where(row >= 1, rot(x, 1, 0), pm1)      # x[g-1, c]
        v2 = jnp.where(row >= 1, rot(v1, 1, 0), pm2)     # x[g-2, c]
        rowsum = v2 + v1 + x                             # 3-tap vertical sum

        # Horizontal taps (cols c-2, c-1, c) via lane rolls; left-edge
        # reflection: col -1 -> 1, col -2 -> 2.
        rs_p1 = rot(rowsum, 1, 1)                        # rowsum[c-1] (wraps at 0)
        rs_m1 = rot(rowsum, -1, 1)                       # rowsum[c+1]
        rs_p2 = rot(rowsum, 2, 1)                        # rowsum[c-2]
        rs_m2 = rot(rowsum, -2, 1)                       # rowsum[c+2]
        s1 = jnp.where(col == 0, rs_m1, rs_p1)
        s2 = jnp.where(col >= 2, rs_p2, jnp.where(col == 0, rs_m2, rowsum))
        total = rowsum + s1 + s2                         # all 9 taps, weight 1

        # Weight-8 tap at (g-1, c-1): add 7 * that value (shift/sub, no int mul).
        c8 = jnp.where(col == 0, rot(v1, -1, 1), rot(v1, 1, 1))
        total = total + ((c8 << 3) - c8)

        # >> 4 and pack straight to uint16 (halves output HBM traffic).
        o_ref[...] = (total >> 4).astype(jnp.uint16)

    return kernel


# ---------------------------------------------------------------------------
# Wrapper
# ---------------------------------------------------------------------------
def _pick_tile_h(H, W, target_bytes=2 << 20):
    """Row-tile height: ~2 MiB of int32 working set, multiple of 8 (masked tail)."""
    if H < 8:
        return H
    rows = target_bytes // (4 * max(W, 1))
    rows = max(8, (rows // 8) * 8)
    if H % 8 == 0:
        return min(rows, H)
    # Keep the tile a multiple of 8; the cdiv grid masks the tail rows.
    return min(rows, max(8, (H // 8) * 8))


def anti_aliasing_filter(bayer_nbit, method="bilateral", tile_h=None):
    """JAX/Pallas equivalent of AntiAliasingFilter.forward.

    Args:
        bayer_nbit: [B, C, H, W] array (the module uses C=1); any int/float dtype.
        method: 'bilateral', 'none', or None.
        tile_h: optional row-tile override (== H, or a multiple of 8).

    Returns:
        'bilateral' -> uint16 array of shape [B, C, H, W]
        'none'/None -> input unchanged
    """
    if method is None or method == "none":
        return bayer_nbit
    if method != "bilateral":
        raise ValueError(f"Unknown denoise method: {method}")

    B, C, H, W = bayer_nbit.shape
    if H < 3 or W < 3:
        raise ValueError("reflect padding of 2 requires H, W >= 3")

    # Fold batch/channel into one grid axis; the filter is per-channel.
    N = B * C
    x = bayer_nbit.reshape(N, H, W)

    # Lane-dense stores: pad W to a multiple of 128 (right pad never affects
    # valid columns; every tap looks left/up only).
    W_pad = ((W + 127) // 128) * 128
    if W_pad != W:
        x = jnp.pad(x, ((0, 0), (0, 0), (0, W_pad - W)))

    if tile_h is None:
        tile_h = _pick_tile_h(H, W_pad)
    tile_h = min(int(tile_h), H)
    if tile_h < 3 or (tile_h != H and tile_h % 8 != 0):
        raise ValueError("tile_h must be >= 3 and either == H or a multiple of 8")
    n_t = pl.cdiv(H, tile_h)

    halo_h = 8 if H >= 8 else H
    bpt = (tile_h // halo_h) if n_t > 1 else 1    # row-tile size in halo blocks

    def main_map(n, t):
        return (n, t, 0)

    def halo_map(n, t):
        # 8-row strip ending at the first row of this tile (clamped for t==0;
        # the kernel uses in-tile reflection there instead).
        return (n, jnp.maximum(t * bpt - 1, 0), 0)

    kernel = _make_kernel(halo_h, _roll_is_numpy_like())

    elem = N * H * W_pad
    in_item = jnp.dtype(bayer_nbit.dtype).itemsize
    cost = pl.CostEstimate(
        flops=16 * elem,
        transcendentals=0,
        bytes_accessed=elem * (in_item + 2),
    )

    # Explicit scoped-VMEM budget: tile + live roll/select temps + pipelined
    # in/out/halo buffers, with margin; safely below every generation's VMEM.
    tile_i32 = tile_h * W_pad * 4
    vmem_limit = int(min(max(10 * tile_i32 + (8 << 20), 24 << 20), 48 << 20))

    out = pl.pallas_call(
        kernel,
        out_shape=jax.ShapeDtypeStruct((N, H, W_pad), jnp.uint16),
        grid=(N, n_t),
        in_specs=[
            pl.BlockSpec((pl.Squeezed(), tile_h, W_pad), main_map),
            pl.BlockSpec((pl.Squeezed(), halo_h, W_pad), halo_map),
        ],
        out_specs=pl.BlockSpec((pl.Squeezed(), tile_h, W_pad), main_map),
        compiler_params=pltpu.CompilerParams(
            # Halo comes from an overlapping in_spec (no sequential carry), so
            # both axes are parallel -> second TensorCore usable on v7x.
            dimension_semantics=("parallel", "parallel"),
            vmem_limit_bytes=vmem_limit,
        ),
        cost_estimate=cost,
    )(x, x)

    if W_pad != W:
        out = out[:, :, :W]
    return out.reshape(B, C, H, W)


# ---------------------------------------------------------------------------
# Pure-JAX reference mirroring the PyTorch bilateral branch exactly.
# ---------------------------------------------------------------------------
def _reference(bayer_nbit):
    bayer = bayer_nbit.astype(jnp.int32)
    padded = jnp.pad(bayer, ((0, 0), (0, 0), (2, 2), (2, 2)), mode="reflect")
    H, W = bayer.shape[2], bayer.shape[3]
    result = jnp.zeros_like(bayer)
    idx = 0
    for i in range(3):
        for j in range(3):
            weight = 8 if idx == 4 else 1
            result = result + weight * padded[:, :, i:i + H, j:j + W]
            idx += 1
    return (result >> 4).astype(jnp.uint16)


if __name__ == "__main__":
    key = jax.random.PRNGKey(0)
    k1, k2, k3, k4 = jax.random.split(key, 4)

    # Case 1: n-bit integer bayer stored as uint16 (W < 128 exercises lane padding).
    B, C, H, W = 2, 1, 16, 16
    x_u16 = jax.random.randint(k1, (B, C, H, W), 0, 1024, dtype=jnp.int32).astype(jnp.uint16)
    out = jax.block_until_ready(anti_aliasing_filter(x_u16))
    assert out.shape == (B, C, H, W), out.shape
    assert out.dtype == jnp.uint16, out.dtype
    assert jnp.array_equal(out, _reference(x_u16)), "uint16 input: mismatch vs reference"

    # Case 2: float input in [0, 1] (truncates toward zero, like torch .to(int32)).
    x_f32 = jax.random.uniform(k2, (B, C, H, W), dtype=jnp.float32)
    out_f = jax.block_until_ready(anti_aliasing_filter(x_f32))
    assert jnp.array_equal(out_f, _reference(x_f32)), "float input: mismatch vs reference"

    # Case 3: multiple row-tiles (halo fetched through the overlapping in_spec).
    B2, C2, H2, W2 = 2, 1, 64, 32
    x_big = jax.random.randint(k3, (B2, C2, H2, W2), 0, 4096, dtype=jnp.int32).astype(jnp.uint16)
    out_big = jax.block_until_ready(anti_aliasing_filter(x_big, tile_h=16))
    assert jnp.array_equal(out_big, _reference(x_big)), "tiled: mismatch vs reference"

    # Case 4: H not divisible by tile_h (masked tail tile) and W not a
    #         multiple of 128 (pad + slice path).
    B3, C3, H3, W3 = 1, 1, 40, 144
    x_odd = jax.random.randint(k4, (B3, C3, H3, W3), 0, 65535, dtype=jnp.int32).astype(jnp.uint16)
    out_odd = jax.block_until_ready(anti_aliasing_filter(x_odd, tile_h=16))
    assert jnp.array_equal(out_odd, _reference(x_odd)), "tail tile: mismatch vs reference"

    # 'none' path passthrough check.
    y = anti_aliasing_filter(x_f32, method="none")
    assert y is x_f32

    print("KERNEL_OK")
</pallas_src>

<mosaic_0001>
module attributes {stable_mosaic.version = 11 : i64} {
  func.func @probe(%arg0: memref<8x128xi32, #tpu.memory_space<vmem>>, %arg1: memref<8x128xi32, #tpu.memory_space<vmem>>) attributes {dimension_semantics = [], scalar_prefetch = 0 : i64, scratch_operands = 0 : i64, tpu.core_type = #tpu.core_type<tc>} {
    %c0 = arith.constant 0 : index
    %c0_0 = arith.constant 0 : index
    %0 = vector.load %arg0[%c0, %c0_0] : memref<8x128xi32, #tpu.memory_space<vmem>>, vector<8x128xi32>
    %c1_i32 = arith.constant 1 : i32
    %1 = tpu.dynamic_rotate %0 by %c1_i32 dim 1 : vector<8x128xi32>, i32 -> vector<8x128xi32>
    %c0_1 = arith.constant 0 : index
    %c0_2 = arith.constant 0 : index
    %2 = vector.load %arg1[%c0_1, %c0_2] : memref<8x128xi32, #tpu.memory_space<vmem>>, vector<8x128xi32>
    tpu.vector_store %arg1[%c0_1, %c0_2], %1 {strides = array<i32>} : memref<8x128xi32, #tpu.memory_space<vmem>>, vector<8x128xi32>,
    return
  }
}

</mosaic_0001>

<llo_original>
// kernel: tpu_custom_call.1
$region0: #{tpu_custom_call.1}
  #allocation0 [shape = 'u32[]', space=smem, size = 0x4, offset = 0x4, fixed_abs, tag = 'smem constant byte address 0x4 - core index']
  #allocation1 [shape = 'u32[144,128]{1,0:T(1,128)}', space=vmem, size = 0x12000, scoped, tag = 'internal scratch']
  %s0 = inlined_call_operand.hbm [shape: s32[8,128], index: 0, kind: input, shape index: {}]
  %s1 = inlined_call_operand.hbm [shape: s32[8,128], index: 1, kind: output, shape index: {}]
  %s2 = sld [smem:[#allocation0]]
  $region18: #{tpu_custom_call.1} parent=0
    _
  %s4 = ssub.s32 1, %s2
  %s5 = scalar_select 0, %s4, %s2
  $region1: #{tpu_custom_call.1} parent=0
    #allocation2 [shape = 'u8[4096]{0}', space=vmem, size = 0x1000, scoped, tag = 'input window, operand 0, single buffered']
    #allocation3 [shape = 's32[1]{0}', space=sflag, size = 0x4, scoped, tag = 'scoped memory for tpu_custom_call.1']
    #allocation4 [shape = 's32[1]{0}', space=sflag, size = 0x4, scoped, tag = 'scoped memory for tpu_custom_call.1']
    #allocation5 [shape = 'u8[4096]{0}', space=vmem, size = 0x1000, scoped, tag = 'output window, operand 0, single buffered']
    %6 = vsyncpa [#allocation3], 0
    %7 = vsyncpa [#allocation4], 0
    // Predicated region
    $region2: #{tpu_custom_call.1} parent=1 // pred_check
      _
    $region3: #{tpu_custom_call.1} parent=1 // pred_check_branch
      %9 = sbr.rel (0) target = $region5
    $region4: #{tpu_custom_call.1} parent=1 // pred_region
      %s11 = ssub.s32 128, 128
      %12 = vsyncadd [#allocation3], %s11
      %s14 = sshll.u32 [#allocation2], 4
      %s15 = int_to_ptr.vmem [resolvable:$true] %s14
      %17 = dma.hbm_to_vmem [thread:$0]  %s0, 128, %s15, [#allocation3]
    $region5: #{tpu_custom_call.1} parent=1 // pred_fallthru
      _
    // Predicated region
    $region6: #{tpu_custom_call.1} parent=1 // pred_check
      _
    $region7: #{tpu_custom_call.1} parent=1 // pred_check_branch
      %19 = sbr.rel (0) target = $region9
    $region8: #{tpu_custom_call.1} parent=1 // pred_region
      %20 = dma.done [#allocation3], 128
    $region9: #{tpu_custom_call.1} parent=1 // pred_fallthru
      _
    %v21 = vld [vmem:[#allocation2] sm:$0xff]
    %22 = vrot.lane.b32.xlu0 %v21, 1
    %v23 = vpop.permute.xlu0 %22
    %24 = vst [vmem:[#allocation5] sm:$0xff] %v23
    // Predicated region
    $region10: #{tpu_custom_call.1} parent=1 // pred_check
      _
    $region11: #{tpu_custom_call.1} parent=1 // pred_check_branch
      %26 = sbr.rel (0) target = $region13
    $region12: #{tpu_custom_call.1} parent=1 // pred_region
      %s28 = ssub.s32 128, 128
      %29 = vsyncadd [#allocation4], %s28
      %s31 = sshll.u32 [#allocation5], 4
      %s32 = int_to_ptr.vmem [resolvable:$true] %s31
      %34 = dma.vmem_to_hbm [thread:$0]  %s32, 128, %s1, [#allocation4]
    $region13: #{tpu_custom_call.1} parent=1 // pred_fallthru
      _
    // Predicated region
    $region14: #{tpu_custom_call.1} parent=1 // pred_check
      _
    $region15: #{tpu_custom_call.1} parent=1 // pred_check_branch
      %36 = sbr.rel (0) target = $region17
    $region16: #{tpu_custom_call.1} parent=1 // pred_region
      %37 = dma.done [#allocation4], 128
    $region17: #{tpu_custom_call.1} parent=1 // pred_fallthru
      _
    %38 = vsyncpa [#allocation3], 1
    %39 = vsyncpa [#allocation4], 1

</llo_original>
